<compile_context>
chip_gen: v5e
topology: v5e:2x2
jax: 0.10.0
libtpu: 0.0.40
codegen_flags: <defaults>
</compile_context>

<pallas_src>
import jax
import jax.numpy as jnp
from jax.experimental import pallas as pl
from jax.experimental.pallas import tpu as pltpu

_LANE = 128
_SUBLANE = 8

# VMEM budget (bytes) for the double-buffered x stream in stage 2.  Small
# enough to fit every generation's scoped-VMEM window with headroom:
#   v5e: 16 MiB default scoped / 128 MiB physical
#   v6e: 32 MiB default scoped / 128 MiB physical
#   v7x: 32 MiB default scoped /  64 MiB physical
_X_STREAM_VMEM_BUDGET = 16 * 1024 * 1024
_VMEM_LIMIT_BYTES = 32 * 1024 * 1024


def _round_up(value, multiple):
    return (value + multiple - 1) // multiple * multiple


def _ws_kernel(w_ref, s_ref, ws_ref):
    # ws = W @ s  -> (H, 1).  Computed once, hoisted out of the row-tiled loop.
    ws_ref[...] = jnp.dot(
        w_ref[...], s_ref[...], preferred_element_type=jnp.float32
    ).astype(ws_ref.dtype)


def _scores_kernel(x_ref, ws_ref, o_ref):
    # scores_tile = x_tile @ ws  -> (BLOCK_ROWS, 1)
    o_ref[...] = jnp.dot(
        x_ref[...], ws_ref[...], preferred_element_type=jnp.float32
    ).astype(o_ref.dtype)


def discriminator_forward(x, weight, summary, *, block_rows=1024):
    """x: (N, H), weight: (H, H), summary: (H,) -> scores: (N,)."""
    n, h = x.shape
    assert weight.shape == (h, h)
    assert summary.shape == (h,)

    # ---- padded / tiled geometry -------------------------------------------
    h_pad = _round_up(h, _LANE)
    itemsize = jnp.dtype(x.dtype).itemsize
    max_rows = max(_SUBLANE, _X_STREAM_VMEM_BUDGET // (2 * h_pad * itemsize))
    blk = min(block_rows, max_rows)
    blk = max(_SUBLANE, (blk // _SUBLANE) * _SUBLANE)
    blk = min(blk, _round_up(n, _SUBLANE))  # never bigger than the problem
    n_pad = _round_up(n, blk)
    grid_rows = n_pad // blk

    # Zero padding is exact: padded x columns hit zero ws entries, padded ws
    # entries come from zero weight rows, padded x rows are sliced off below.
    x_p = x
    if n_pad != n or h_pad != h:
        x_p = jnp.pad(x, ((0, n_pad - n), (0, h_pad - h)))
    w_p = weight
    if h_pad != h:
        w_p = jnp.pad(weight, ((0, h_pad - h), (0, h_pad - h)))
    s_col = summary.reshape(h, 1)
    if h_pad != h:
        s_col = jnp.pad(s_col, ((0, h_pad - h), (0, 0)))

    # ---- stage 1: ws = W @ s (single small matvec) --------------------------
    # TODO(synk): for very large H, tile this (H,H) matvec as well; fine for
    # typical DGI hidden sizes.
    ws = pl.pallas_call(
        _ws_kernel,
        out_shape=jax.ShapeDtypeStruct((h_pad, 1), jnp.float32),
        grid_spec=pltpu.PrefetchScalarGridSpec(
            num_scalar_prefetch=0,
            grid=(1,),
            in_specs=[
                pl.BlockSpec((h_pad, h_pad), lambda i: (0, 0)),
                pl.BlockSpec((h_pad, 1), lambda i: (0, 0)),
            ],
            out_specs=pl.BlockSpec((h_pad, 1), lambda i: (0, 0)),
        ),
        compiler_params=pltpu.CompilerParams(
            dimension_semantics=("arbitrary",),
            vmem_limit_bytes=_VMEM_LIMIT_BYTES,
        ),
    )(w_p, s_col)

    # ---- stage 2: scores = x @ ws, streamed over row tiles ------------------
    out = pl.pallas_call(
        _scores_kernel,
        out_shape=jax.ShapeDtypeStruct((n_pad, 1), x.dtype),
        grid_spec=pltpu.PrefetchScalarGridSpec(
            num_scalar_prefetch=0,
            grid=(grid_rows,),
            in_specs=[
                # x tile streams (double-buffered by the BlockSpec pipeline).
                pl.BlockSpec((blk, h_pad), lambda i: (i, 0)),
                # ws: constant index_map -> DMA'd once, stays resident.
                pl.BlockSpec((h_pad, 1), lambda i: (0, 0)),
            ],
            out_specs=pl.BlockSpec((blk, 1), lambda i: (i, 0)),
        ),
        compiler_params=pltpu.CompilerParams(
            # Row tiles are independent: shard across TensorCores on v7x.
            dimension_semantics=("parallel",),
            vmem_limit_bytes=_VMEM_LIMIT_BYTES,
        ),
    )(x_p, ws)

    return out.reshape(n_pad)[:n]


def xavier_uniform(key, shape, gain=1.414, dtype=jnp.float32):
    fan_in, fan_out = shape[0], shape[1]
    bound = gain * jnp.sqrt(6.0 / (fan_in + fan_out))
    return jax.random.uniform(key, shape, dtype=dtype, minval=-bound, maxval=bound)


if __name__ == "__main__":
    key = jax.random.PRNGKey(0)

    # Case 1: small shapes consistent with the module (16 "nodes", hidden=32).
    k_w, k_x, k_s, key = jax.random.split(key, 4)
    N, H = 16, 32
    weight = xavier_uniform(k_w, (H, H), gain=1.414)
    x = jax.random.normal(k_x, (N, H), dtype=jnp.float32)
    summary = jax.random.normal(k_s, (H,), dtype=jnp.float32)

    scores = jax.block_until_ready(discriminator_forward(x, weight, summary))
    ref = x @ (weight @ summary)
    assert scores.shape == (N,)
    assert jnp.allclose(scores, ref, atol=1e-3, rtol=1e-3), "case1 mismatch"

    # Case 2: exercises padding (H not multiple of 128, N not multiple of the
    # tile) and a multi-step "parallel" row grid (block_rows forced small).
    k_w2, k_x2, k_s2, key = jax.random.split(key, 4)
    N2, H2 = 300, 96
    weight2 = xavier_uniform(k_w2, (H2, H2), gain=1.414)
    x2 = jax.random.normal(k_x2, (N2, H2), dtype=jnp.float32)
    summary2 = jax.random.normal(k_s2, (H2,), dtype=jnp.float32)

    scores2 = jax.block_until_ready(
        discriminator_forward(x2, weight2, summary2, block_rows=128)
    )
    ref2 = x2 @ (weight2 @ summary2)
    assert scores2.shape == (N2,)
    assert jnp.allclose(scores2, ref2, atol=1e-3, rtol=1e-3), "case2 mismatch"

    print("KERNEL_OK")
</pallas_src>

<mosaic_0001>
module attributes {stable_mosaic.version = 11 : i64} {
  func.func @_ws_kernel(%arg0: i32, %arg1: memref<128x128xf32, #tpu.memory_space<vmem>>, %arg2: memref<128x1xf32, #tpu.memory_space<vmem>>, %arg3: memref<128x1xf32, #tpu.memory_space<vmem>>) attributes {dimension_semantics = [#tpu.dimension_semantics<arbitrary>], iteration_bounds = array<i64: 1>, scalar_prefetch = 0 : i64, scratch_operands = 0 : i64, tpu.core_type = #tpu.core_type<tc>, window_params = [{pipeline_mode = #tpu.pipeline_mode<synchronous>, transform_indices = @transform_0, window_bounds = array<i64: 128, 128>}, {pipeline_mode = #tpu.pipeline_mode<synchronous>, transform_indices = @transform_1, window_bounds = array<i64: 128, 1>}, {pipeline_mode = #tpu.pipeline_mode<synchronous>, transform_indices = @transform_2, window_bounds = array<i64: 128, 1>}]} {
    %c0 = arith.constant 0 : index
    %c0_0 = arith.constant 0 : index
    %0 = vector.load %arg1[%c0, %c0_0] : memref<128x128xf32, #tpu.memory_space<vmem>>, vector<128x128xf32>
    %c0_1 = arith.constant 0 : index
    %c0_2 = arith.constant 0 : index
    %1 = vector.load %arg2[%c0_1, %c0_2] : memref<128x1xf32, #tpu.memory_space<vmem>>, vector<128x1xf32>
    %cst = arith.constant dense<0.000000e+00> : vector<128x1xf32>
    %2 = tpu.matmul %0, %1, %cst {dimension_numbers = #tpu.dot_dimension_numbers<[1], [0], [0], [1], [0, 0, 1, 1], [], []>} : vector<128x128xf32>, vector<128x1xf32>, vector<128x1xf32> -> vector<128x1xf32>
    %c0_3 = arith.constant 0 : index
    %c0_4 = arith.constant 0 : index
    %3 = vector.load %arg3[%c0_3, %c0_4] : memref<128x1xf32, #tpu.memory_space<vmem>>, vector<128x1xf32>
    tpu.vector_store %arg3[%c0_3, %c0_4], %2 {strides = array<i32>} : memref<128x1xf32, #tpu.memory_space<vmem>>, vector<128x1xf32>,
    return
  }
  func.func @transform_0(%arg0: i32) -> (i32, i32) {
    %c0_i32 = arith.constant 0 : i32
    %c0_i32_0 = arith.constant 0 : i32
    %c0_i32_1 = arith.constant 0 : i32
    return %c0_i32, %c0_i32_0 : i32, i32
  }
  func.func @transform_1(%arg0: i32) -> (i32, i32) {
    %c0_i32 = arith.constant 0 : i32
    %c0_i32_0 = arith.constant 0 : i32
    %c0_i32_1 = arith.constant 0 : i32
    return %c0_i32, %c0_i32_0 : i32, i32
  }
  func.func @transform_2(%arg0: i32) -> (i32, i32) {
    %c0_i32 = arith.constant 0 : i32
    %c0_i32_0 = arith.constant 0 : i32
    %c0_i32_1 = arith.constant 0 : i32
    return %c0_i32, %c0_i32_0 : i32, i32
  }
}

</mosaic_0001>

<llo_original>
// kernel: tpu_custom_call.1
$region0: #{tpu_custom_call.1}
  #allocation0 [shape = 'u32[]', space=smem, size = 0x4, offset = 0x4, fixed_abs, tag = 'smem constant byte address 0x4 - core index']
  #allocation1 [shape = 'u32[72,128]{1,0:T(1,128)}', space=vmem, size = 0x9000, scoped, tag = 'internal scratch']
  %s0 = inlined_call_operand.vmem [shape: f32[128,128], index: 0, kind: input, shape index: {}]
  %s1 = inlined_call_operand.vmem [shape: f32[128,1], index: 1, kind: input, shape index: {}]
  %s2 = inlined_call_operand.vmem [shape: f32[128,1], index: 2, kind: output, shape index: {}]
  %s3 = sld [smem:[#allocation0]]
  $region18: #{tpu_custom_call.1} parent=0
    _
  %s5 = ssub.s32 1, %s3
  %s6 = scalar_select 0, %s5, %s3
  // Predicated region
  $region2: #{tpu_custom_call.1} parent=0 // pred_check
    _
  $region3: #{tpu_custom_call.1} parent=0 // pred_check_branch
    %8 = sbr.rel (0) target = $region5
  $region4: #{tpu_custom_call.1} parent=0 // pred_region
    _
  $region5: #{tpu_custom_call.1} parent=0 // pred_fallthru
    _
  // Predicated region
  $region6: #{tpu_custom_call.1} parent=0 // pred_check
    _
  $region7: #{tpu_custom_call.1} parent=0 // pred_check_branch
    %10 = sbr.rel (0) target = $region9
  $region8: #{tpu_custom_call.1} parent=0 // pred_region
    _
  $region9: #{tpu_custom_call.1} parent=0 // pred_fallthru
    _
  %v11 = vld [vmem:[%s0] sm:$0xff]
  %v12 = vld [vmem:[%s0 + $0x8] sm:$0xff]
  %v13 = vld [vmem:[%s0 + $0x10] sm:$0xff]
  %v14 = vld [vmem:[%s0 + $0x18] sm:$0xff]
  %v15 = vld [vmem:[%s0 + $0x20] sm:$0xff]
  %v16 = vld [vmem:[%s0 + $0x28] sm:$0xff]
  %v17 = vld [vmem:[%s0 + $0x30] sm:$0xff]
  %v18 = vld [vmem:[%s0 + $0x38] sm:$0xff]
  %v19 = vld [vmem:[%s0 + $0x40] sm:$0xff]
  %v20 = vld [vmem:[%s0 + $0x48] sm:$0xff]
  %v21 = vld [vmem:[%s0 + $0x50] sm:$0xff]
  %v22 = vld [vmem:[%s0 + $0x58] sm:$0xff]
  %v23 = vld [vmem:[%s0 + $0x60] sm:$0xff]
  %v24 = vld [vmem:[%s0 + $0x68] sm:$0xff]
  %v25 = vld [vmem:[%s0 + $0x70] sm:$0xff]
  %v26 = vld [vmem:[%s0 + $0x78] sm:$0xff]
  %v27 = vld [vmem:[%s1] sm:$0xff]
  %v28 = vld [vmem:[%s1 + $0x8] sm:$0xff]
  %v29 = vld [vmem:[%s1 + $0x10] sm:$0xff]
  %v30 = vld [vmem:[%s1 + $0x18] sm:$0xff]
  %v31 = vld [vmem:[%s1 + $0x20] sm:$0xff]
  %v32 = vld [vmem:[%s1 + $0x28] sm:$0xff]
  %v33 = vld [vmem:[%s1 + $0x30] sm:$0xff]
  %v34 = vld [vmem:[%s1 + $0x38] sm:$0xff]
  %v35 = vld [vmem:[%s1 + $0x40] sm:$0xff]
  %v36 = vld [vmem:[%s1 + $0x48] sm:$0xff]
  %v37 = vld [vmem:[%s1 + $0x50] sm:$0xff]
  %v38 = vld [vmem:[%s1 + $0x58] sm:$0xff]
  %v39 = vld [vmem:[%s1 + $0x60] sm:$0xff]
  %v40 = vld [vmem:[%s1 + $0x68] sm:$0xff]
  %v41 = vld [vmem:[%s1 + $0x70] sm:$0xff]
  %v42 = vld [vmem:[%s1 + $0x78] sm:$0xff]
  %43 = vmatpush.msra.mxu0 %v42
  %44 = vmatpush.msra.mxu0 %v41
  %45 = vmatpush.msra.mxu0 %v40
  %46 = vmatpush.msra.mxu0 %v39
  %47 = vmatpush.msra.mxu0 %v38
  %48 = vmatpush.msra.mxu0 %v37
  %49 = vmatpush.msra.mxu0 %v36
  %50 = vmatpush.msra.mxu0 %v35
  %51 = vmatpush.msra.mxu0 %v34
  %52 = vmatpush.msra.mxu0 %v33
  %53 = vmatpush.msra.mxu0 %v32
  %54 = vmatpush.msra.mxu0 %v31
  %55 = vmatpush.msra.mxu0 %v30
  %56 = vmatpush.msra.mxu0 %v29
  %57 = vmatpush.msra.mxu0 %v28
  %58 = vmatpush.msra.mxu0 %v27
  %59 = vmatmul.f32.gmra.mxu0 %v11
  %v60 = vpop.f32.mrf.mxu0
  %v61 = vadd.f32 0.0, %v60
  %62 = vmatmul.f32.gmra.mxu0 %v12
  %v63 = vpop.f32.mrf.mxu0
  %v64 = vadd.f32 0.0, %v63
  %65 = vmatmul.f32.gmra.mxu0 %v13
  %v66 = vpop.f32.mrf.mxu0
  %v67 = vadd.f32 0.0, %v66
  %68 = vmatmul.f32.gmra.mxu0 %v14
  %v69 = vpop.f32.mrf.mxu0
  %v70 = vadd.f32 0.0, %v69
  %71 = vmatmul.f32.gmra.mxu0 %v15
  %v72 = vpop.f32.mrf.mxu0
  %v73 = vadd.f32 0.0, %v72
  %74 = vmatmul.f32.gmra.mxu0 %v16
  %v75 = vpop.f32.mrf.mxu0
  %v76 = vadd.f32 0.0, %v75
  %77 = vmatmul.f32.gmra.mxu0 %v17
  %v78 = vpop.f32.mrf.mxu0
  %v79 = vadd.f32 0.0, %v78
  %80 = vmatmul.f32.gmra.mxu0 %v18
  %v81 = vpop.f32.mrf.mxu0
  %v82 = vadd.f32 0.0, %v81
  %83 = vmatmul.f32.gmra.mxu0 %v19
  %v84 = vpop.f32.mrf.mxu0
  %v85 = vadd.f32 0.0, %v84
  %86 = vmatmul.f32.gmra.mxu0 %v20
  %v87 = vpop.f32.mrf.mxu0
  %v88 = vadd.f32 0.0, %v87
  %89 = vmatmul.f32.gmra.mxu0 %v21
  %v90 = vpop.f32.mrf.mxu0
  %v91 = vadd.f32 0.0, %v90
  %92 = vmatmul.f32.gmra.mxu0 %v22
  %v93 = vpop.f32.mrf.mxu0
  %v94 = vadd.f32 0.0, %v93
  %95 = vmatmul.f32.gmra.mxu0 %v23
  %v96 = vpop.f32.mrf.mxu0
  %v97 = vadd.f32 0.0, %v96
  %98 = vmatmul.f32.gmra.mxu0 %v24
  %v99 = vpop.f32.mrf.mxu0
  %v100 = vadd.f32 0.0, %v99
  %101 = vmatmul.f32.gmra.mxu0 %v25
  %v102 = vpop.f32.mrf.mxu0
  %v103 = vadd.f32 0.0, %v102
  %104 = vmatmul.f32.gmra.mxu0 %v26
  %v105 = vpop.f32.mrf.mxu0
  %v106 = vadd.f32 0.0, %v105
  %107 = vdwg.mxu0
  %vm108 = vcmask 7168
  %109 = vst.msk [vmem:[%s2] sm:$0xff] %vm108, %v61
  %110 = vst.msk [vmem:[%s2 + $0x8] sm:$0xff] %vm108, %v64
  %111 = vst.msk [vmem:[%s2 + $0x10] sm:$0xff] %vm108, %v67
  %112 = vst.msk [vmem:[%s2 + $0x18] sm:$0xff] %vm108, %v70
  %113 = vst.msk [vmem:[%s2 + $0x20] sm:$0xff] %vm108, %v73
  %114 = vst.msk [vmem:[%s2 + $0x28] sm:$0xff] %vm108, %v76
  %115 = vst.msk [vmem:[%s2 + $0x30] sm:$0xff] %vm108, %v79
  %116 = vst.msk [vmem:[%s2 + $0x38] sm:$0xff] %vm108, %v82
  %117 = vst.msk [vmem:[%s2 + $0x40] sm:$0xff] %vm108, %v85
  %118 = vst.msk [vmem:[%s2 + $0x48] sm:$0xff] %vm108, %v88
  %119 = vst.msk [vmem:[%s2 + $0x50] sm:$0xff] %vm108, %v91
  %120 = vst.msk [vmem:[%s2 + $0x58] sm:$0xff] %vm108, %v94
  %121 = vst.msk [vmem:[%s2 + $0x60] sm:$0xff] %vm108, %v97
  %122 = vst.msk [vmem:[%s2 + $0x68] sm:$0xff] %vm108, %v100
  %123 = vst.msk [vmem:[%s2 + $0x70] sm:$0xff] %vm108, %v103
  %124 = vst.msk [vmem:[%s2 + $0x78] sm:$0xff] %vm108, %v106
  // Predicated region
  $region10: #{tpu_custom_call.1} parent=0 // pred_check
    _
  $region11: #{tpu_custom_call.1} parent=0 // pred_check_branch
    %126 = sbr.rel (0) target = $region13
  $region12: #{tpu_custom_call.1} parent=0 // pred_region
    _
  $region13: #{tpu_custom_call.1} parent=0 // pred_fallthru
    _
  // Predicated region
  $region14: #{tpu_custom_call.1} parent=0 // pred_check
    _
  $region15: #{tpu_custom_call.1} parent=0 // pred_check_branch
    %128 = sbr.rel (0) target = $region17
  $region16: #{tpu_custom_call.1} parent=0 // pred_region
    _
  $region17: #{tpu_custom_call.1} parent=0 // pred_fallthru
    _

</llo_original>
